<compile_context>
chip_gen: v6e
topology: v6e:2x2x1
jax: 0.10.0
libtpu: 0.0.40
codegen_flags: <defaults>
</compile_context>

<pallas_src>
import functools

import numpy as np
import jax
import jax.numpy as jnp
from jax.experimental import pallas as pl
from jax.experimental.pallas import tpu as pltpu


# ---------------------------------------------------------------------------
# Kernel 1: scaled block mask  (1 - maxpool(bernoulli)) * numel / sum
# ---------------------------------------------------------------------------
def _mask_kernel(gamma_ref, u_ref, m_ref, *, block_size):
    N, H, W = u_ref.shape
    p = block_size // 2
    gamma = gamma_ref[0]

    # Bernoulli(gamma) seed mask  (== torch.rand(N, H, W) < gamma).
    seed = (u_ref[...] < gamma).astype(jnp.float32)

    # Separable stride-1 max pool (kernel=block_size, padding=block_size//2):
    # 2*block_size shifted-max taps instead of block_size**2 2-D taps.
    # Out-of-bounds taps contribute 0, which equals -inf padding here because
    # the offset-0 tap is always in-bounds and seed >= 0.
    def pool_axis(x, axis):
        size = x.shape[axis]
        out = x                                    # offset-0 tap
        for a in range(block_size):
            d = a - p                              # offsets -p .. block_size-1-p
            if d == 0 or abs(d) >= size:
                continue
            idx = [slice(None)] * x.ndim
            zshape = list(x.shape)
            zshape[axis] = abs(d)
            zeros = jnp.zeros(zshape, x.dtype)
            if d > 0:
                idx[axis] = slice(d, size)
                shifted = jnp.concatenate([x[tuple(idx)], zeros], axis=axis)
            else:
                idx[axis] = slice(0, size + d)
                shifted = jnp.concatenate([zeros, x[tuple(idx)]], axis=axis)
            out = jnp.maximum(out, shifted)
        return out

    pooled = pool_axis(pool_axis(seed, axis=2), axis=1)   # lanes, then sublanes
    block_mask = 1.0 - pooled

    # Matches PyTorch's  out * block_mask.numel() / block_mask.sum()
    # (divide-by-zero when everything is dropped mirrors PyTorch behaviour).
    scale = jnp.float32(N * H * W) / jnp.sum(block_mask)
    m_ref[...] = block_mask * scale


# ---------------------------------------------------------------------------
# Kernel 2: apply phase (HBM-bound broadcast multiply), tiled over channels
# ---------------------------------------------------------------------------
def _apply_kernel(m_ref, x_ref, o_ref):
    m = m_ref[...]                                  # (N, HW) f32, resident block
    o_ref[...] = (x_ref[...].astype(jnp.float32) * m[:, None, :]).astype(o_ref.dtype)


def _pick_channel_tile(N, C, HW, itemsize, budget_bytes=8 * 1024 * 1024):
    """Largest channel tile whose double-buffered in+out footprint fits the
    budget (sized conservatively for v7x's 64 MiB VMEM; v5e/v6e have headroom)."""
    per_channel = 4 * N * HW * itemsize             # 2 buffers x (input + output)
    tc = int(max(1, budget_bytes // max(per_channel, 1)))
    if tc >= C:
        return C
    tc = max(8, (tc // 8) * 8)                      # second-minor block dim: multiple of 8
    while tc > 8 and C % tc:
        tc -= 8
    if C % tc:
        # TODO(synk): ragged channel counts fall back to a single full-C block.
        return C
    return tc


@functools.partial(jax.jit, static_argnames=("block_size",))
def dropblock2d_pallas(x, gamma, key, *, block_size):
    N, C, H, W = x.shape
    HW = H * W

    # TODO(synk): on a bare TPU the uniforms could be drawn in-kernel with
    # pltpu.prng_seed / prng_random_bits; host-side jax.random is used so the
    # kernel also lowers under the CPU/interpret Pallas fallback.
    u = jax.random.uniform(key, (N, H, W), dtype=jnp.float32)

    scaled_mask = pl.pallas_call(
        functools.partial(_mask_kernel, block_size=block_size),
        out_shape=jax.ShapeDtypeStruct((N, H, W), jnp.float32),
        in_specs=[
            pl.BlockSpec(memory_space=pltpu.MemorySpace.SMEM),   # gamma scalar
            pl.BlockSpec(memory_space=pltpu.MemorySpace.VMEM),   # uniforms
        ],
        out_specs=pl.BlockSpec(memory_space=pltpu.MemorySpace.VMEM),
    )(gamma, u)

    # Lane-dense layout for the HBM-bound apply phase: fold (H, W) -> H*W so the
    # last (lane) axis is a multiple of 128 for typical feature maps.
    x2 = x.reshape(N, C, HW)
    m2 = scaled_mask.reshape(N, HW)

    tc = _pick_channel_tile(N, C, HW, x.dtype.itemsize)
    out2 = pl.pallas_call(
        _apply_kernel,
        out_shape=jax.ShapeDtypeStruct((N, C, HW), x.dtype),
        grid=(pl.cdiv(C, tc),),
        in_specs=[
            pl.BlockSpec((N, HW), lambda c: (0, 0)),         # mask stays resident
            pl.BlockSpec((N, tc, HW), lambda c: (0, c, 0)),  # x channel tile
        ],
        out_specs=pl.BlockSpec((N, tc, HW), lambda c: (0, c, 0)),
        compiler_params=pltpu.CompilerParams(
            dimension_semantics=("parallel",),
            vmem_limit_bytes=32 * 1024 * 1024,
        ),
    )(m2, x2)
    return out2.reshape(N, C, H, W)


# ---------------------------------------------------------------------------
# Pure-JAX reference (mirrors the PyTorch DropBlock2D forward) for validation
# ---------------------------------------------------------------------------
def dropblock2d_reference(x, u, drop_prob, block_size):
    gamma = jnp.float32(drop_prob / (block_size ** 2))
    p = block_size // 2
    seed = (u < gamma).astype(jnp.float32)
    pooled = jax.lax.reduce_window(
        seed, -jnp.inf, jax.lax.max,
        window_dimensions=(1, block_size, block_size),
        window_strides=(1, 1, 1),
        padding=((0, 0), (p, p), (p, p)))
    if block_size % 2 == 0:
        pooled = pooled[:, :-1, :-1]
    block_mask = 1.0 - pooled
    scale = block_mask.size / jnp.sum(block_mask)
    return x * block_mask[:, None, :, :] * scale


# ---------------------------------------------------------------------------
# Module wrappers mirroring the PyTorch classes
# ---------------------------------------------------------------------------
class DropBlock2D:
    """DropBlock2D whose forward pass runs as Pallas TPU kernels."""

    def __init__(self, drop_prob, block_size):
        self.drop_prob = float(drop_prob)
        self.block_size = int(block_size)
        self.training = True

    def __call__(self, x, key=None):
        if (not self.training) or self.drop_prob == 0.0:
            return x
        if key is None:
            key = jax.random.PRNGKey(0)
        gamma = jnp.asarray([self.drop_prob / (self.block_size ** 2)],
                            dtype=jnp.float32)
        return dropblock2d_pallas(x, gamma, key, block_size=self.block_size)


class LinearScheduler:
    """Mirrors the PyTorch LinearScheduler: forward delegates to the wrapped
    dropblock; step() linearly anneals drop_prob (host-side Python state)."""

    def __init__(self, dropblock, start_value, stop_value, nr_steps):
        self.dropblock = dropblock
        self.i = 0
        self.drop_values = np.linspace(start=start_value, stop=stop_value,
                                       num=nr_steps)

    def __call__(self, x, key=None):
        return self.forward(x, key=key)

    def forward(self, x, key=None):
        return self.dropblock(x, key=key)

    def step(self):
        # TODO(synk): mutable scheduler state stays on the host; it only sets a
        # scalar (drop_prob) consumed by the kernel at the next forward call.
        self.i = self.i + 1
        if self.i < len(self.drop_values):
            self.dropblock.drop_prob = float(self.drop_values[self.i])


if __name__ == "__main__":
    root = jax.random.PRNGKey(0)
    k_x, k_drop = jax.random.split(root)
    x = jax.random.normal(k_x, (2, 4, 16, 16), dtype=jnp.float32)

    dropblock = DropBlock2D(drop_prob=0.0, block_size=3)
    scheduler = LinearScheduler(dropblock, start_value=0.0, stop_value=0.25,
                                nr_steps=5)
    # Advance the schedule so drop_prob > 0 and the kernel path executes.
    for _ in range(3):
        scheduler.step()

    out = scheduler(x, key=k_drop)
    jax.block_until_ready(out)
    assert out.shape == x.shape and out.dtype == x.dtype
    assert bool(jnp.all(jnp.isfinite(out)))

    # Correctness check against a pure-JAX reference using the same uniforms.
    u = jax.random.uniform(k_drop, (x.shape[0], x.shape[2], x.shape[3]),
                           dtype=jnp.float32)
    ref = dropblock2d_reference(x, u, dropblock.drop_prob, dropblock.block_size)
    np.testing.assert_allclose(np.asarray(out), np.asarray(ref),
                               rtol=1e-5, atol=1e-5)

    print("KERNEL_OK")
</pallas_src>

<mosaic_0001>
module attributes {stable_mosaic.version = 11 : i64} {
  func.func @_mask_kernel(%arg0: memref<1xf32, #tpu.memory_space<smem>>, %arg1: memref<2x16x16xf32, #tpu.memory_space<vmem>>, %arg2: memref<2x16x16xf32, #tpu.memory_space<vmem>>) attributes {dimension_semantics = [], scalar_prefetch = 0 : i64, scratch_operands = 0 : i64, tpu.core_type = #tpu.core_type<tc>} {
    %c0 = arith.constant 0 : index
    %0 = memref.load %arg0[%c0] : memref<1xf32, #tpu.memory_space<smem>>
    %c0_0 = arith.constant 0 : index
    %c0_1 = arith.constant 0 : index
    %c0_2 = arith.constant 0 : index
    %1 = vector.load %arg1[%c0_0, %c0_1, %c0_2] : memref<2x16x16xf32, #tpu.memory_space<vmem>>, vector<2x16x16xf32>
    %2 = vector.broadcast %0 : f32 to vector<2x16x16xf32>
    %3 = arith.cmpf olt, %1, %2 : vector<2x16x16xf32>
    %4 = arith.extui %3 : vector<2x16x16xi1> to vector<2x16x16xi32>
    %5 = arith.sitofp %4 : vector<2x16x16xi32> to vector<2x16x16xf32>
    %cst = arith.constant 0.000000e+00 : f32
    %6 = vector.broadcast %cst : f32 to vector<2x16x1xf32>
    %7 = vector.extract_strided_slice %5 {offsets = [0, 0, 0], sizes = [2, 16, 15], strides = [1, 1, 1]} : vector<2x16x16xf32> to vector<2x16x15xf32>
    %8 = tpu.concatenate %6, %7 in 2 : vector<2x16x1xf32>, vector<2x16x15xf32> -> vector<2x16x16xf32>
    %9 = arith.maximumf %5, %8 : vector<2x16x16xf32>
    %cst_3 = arith.constant 0.000000e+00 : f32
    %10 = vector.broadcast %cst_3 : f32 to vector<2x16x1xf32>
    %11 = vector.extract_strided_slice %5 {offsets = [0, 0, 1], sizes = [2, 16, 15], strides = [1, 1, 1]} : vector<2x16x16xf32> to vector<2x16x15xf32>
    %12 = tpu.concatenate %11, %10 in 2 : vector<2x16x15xf32>, vector<2x16x1xf32> -> vector<2x16x16xf32>
    %13 = arith.maximumf %9, %12 : vector<2x16x16xf32>
    %cst_4 = arith.constant 0.000000e+00 : f32
    %14 = vector.broadcast %cst_4 : f32 to vector<2x1x16xf32>
    %15 = vector.extract_strided_slice %13 {offsets = [0, 0, 0], sizes = [2, 15, 16], strides = [1, 1, 1]} : vector<2x16x16xf32> to vector<2x15x16xf32>
    %16 = tpu.concatenate %14, %15 in 1 : vector<2x1x16xf32>, vector<2x15x16xf32> -> vector<2x16x16xf32>
    %17 = arith.maximumf %13, %16 : vector<2x16x16xf32>
    %cst_5 = arith.constant 0.000000e+00 : f32
    %18 = vector.broadcast %cst_5 : f32 to vector<2x1x16xf32>
    %19 = vector.extract_strided_slice %13 {offsets = [0, 1, 0], sizes = [2, 15, 16], strides = [1, 1, 1]} : vector<2x16x16xf32> to vector<2x15x16xf32>
    %20 = tpu.concatenate %19, %18 in 1 : vector<2x15x16xf32>, vector<2x1x16xf32> -> vector<2x16x16xf32>
    %21 = arith.maximumf %17, %20 : vector<2x16x16xf32>
    %cst_6 = arith.constant 1.000000e+00 : f32
    %22 = vector.broadcast %cst_6 : f32 to vector<2x16x16xf32>
    %23 = arith.subf %22, %21 : vector<2x16x16xf32>
    %24 = vector.shape_cast %23 : vector<2x16x16xf32> to vector<1x2x16x16xf32>
    %cst_7 = arith.constant dense<0.000000e+00> : vector<1xf32>
    %25 = vector.multi_reduction <add>, %24, %cst_7 [1, 2, 3] : vector<1x2x16x16xf32> to vector<1xf32>
    %26 = vector.shape_cast %25 : vector<1xf32> to vector<1x1x1x1xf32>
    %27 = vector.extract %26[0, 0, 0, 0] : f32 from vector<1x1x1x1xf32>
    %cst_8 = arith.constant 5.120000e+02 : f32
    %28 = arith.divf %cst_8, %27 : f32
    %29 = vector.broadcast %28 : f32 to vector<2x16x16xf32>
    %30 = arith.mulf %23, %29 : vector<2x16x16xf32>
    %c0_9 = arith.constant 0 : index
    %c0_10 = arith.constant 0 : index
    %c0_11 = arith.constant 0 : index
    %31 = vector.load %arg2[%c0_9, %c0_10, %c0_11] : memref<2x16x16xf32, #tpu.memory_space<vmem>>, vector<2x16x16xf32>
    tpu.vector_store %arg2[%c0_9, %c0_10, %c0_11], %30 {strides = array<i32>} : memref<2x16x16xf32, #tpu.memory_space<vmem>>, vector<2x16x16xf32>,
    return
  }
}

module attributes {stable_mosaic.version = 11 : i64} {
  func.func @_apply_kernel(%arg0: i32, %arg1: memref<2x256xf32, #tpu.memory_space<vmem>>, %arg2: memref<2x4x256xf32, #tpu.memory_space<vmem>>, %arg3: memref<2x4x256xf32, #tpu.memory_space<vmem>>) attributes {dimension_semantics = [#tpu.dimension_semantics<parallel>], iteration_bounds = array<i64: 1>, scalar_prefetch = 0 : i64, scratch_operands = 0 : i64, tpu.core_type = #tpu.core_type<tc>, window_params = [{pipeline_mode = #tpu.pipeline_mode<synchronous>, transform_indices = @transform_0, window_bounds = array<i64: 2, 256>}, {transform_indices = @transform_1, window_bounds = array<i64: 2, 4, 256>}, {transform_indices = @transform_2, window_bounds = array<i64: 2, 4, 256>}]} {
    %c0 = arith.constant 0 : index
    %c0_0 = arith.constant 0 : index
    %0 = vector.load %arg1[%c0, %c0_0] : memref<2x256xf32, #tpu.memory_space<vmem>>, vector<2x256xf32>
    %c0_1 = arith.constant 0 : index
    %c0_2 = arith.constant 0 : index
    %c0_3 = arith.constant 0 : index
    %1 = vector.load %arg2[%c0_1, %c0_2, %c0_3] : memref<2x4x256xf32, #tpu.memory_space<vmem>>, vector<2x4x256xf32>
    %2 = vector.shape_cast %0 : vector<2x256xf32> to vector<2x1x256xf32>
    %3 = vector.broadcast %2 : vector<2x1x256xf32> to vector<2x4x256xf32>
    %4 = arith.mulf %1, %3 : vector<2x4x256xf32>
    %c0_4 = arith.constant 0 : index
    %c0_5 = arith.constant 0 : index
    %c0_6 = arith.constant 0 : index
    %5 = vector.load %arg3[%c0_4, %c0_5, %c0_6] : memref<2x4x256xf32, #tpu.memory_space<vmem>>, vector<2x4x256xf32>
    tpu.vector_store %arg3[%c0_4, %c0_5, %c0_6], %4 {strides = array<i32>} : memref<2x4x256xf32, #tpu.memory_space<vmem>>, vector<2x4x256xf32>,
    return
  }
  func.func @transform_0(%arg0: i32) -> (i32, i32) {
    %c0_i32 = arith.constant 0 : i32
    %c0_i32_0 = arith.constant 0 : i32
    %c0_i32_1 = arith.constant 0 : i32
    return %c0_i32, %c0_i32_0 : i32, i32
  }
  func.func @transform_1(%arg0: i32) -> (i32, i32, i32) {
    %c0_i32 = arith.constant 0 : i32
    %c0_i32_0 = arith.constant 0 : i32
    %c0_i32_1 = arith.constant 0 : i32
    return %c0_i32, %arg0, %c0_i32_0 : i32, i32, i32
  }
  func.func @transform_2(%arg0: i32) -> (i32, i32, i32) {
    %c0_i32 = arith.constant 0 : i32
    %c0_i32_0 = arith.constant 0 : i32
    %c0_i32_1 = arith.constant 0 : i32
    return %c0_i32, %arg0, %c0_i32_0 : i32, i32, i32
  }
}

</mosaic_0001>

<llo_original>
// kernel: dropblock2d_pallas.2
$region0: #{dropblock2d_pallas.2}
  #allocation0 [shape = 'u32[]', space=smem, size = 0x4, offset = 0x4, fixed_abs, tag = 'smem constant byte address 0x4 - core index']
  #allocation1 [shape = 'u32[144,128]{1,0:T(1,128)}', space=vmem, size = 0x12000, scoped, tag = 'internal scratch']
  #allocation2 [shape = 'f32[1]{0:T(128)S(6)}', space=smem, size = 0x200, scoped, tag = 'scoped memory for dropblock2d_pallas.2']
  %s0 = inlined_call_operand.<no memory space> [shape: f32[1], index: 0, kind: input, shape index: {}]
  %s1 = inlined_call_operand.vmem [shape: f32[2,16,16], index: 1, kind: input, shape index: {}]
  %s2 = inlined_call_operand.vmem [shape: f32[2,16,16], index: 2, kind: output, shape index: {}]
  %s3 = sld [smem:[#allocation0]]
  $region18: #{dropblock2d_pallas.2} parent=0
    _
  %s5 = ssub.s32 1, %s3
  %s6 = scalar_select 0, %s5, %s3
  %7 = sst [smem:[#allocation2]] %s0
  // Predicated region
  $region2: #{dropblock2d_pallas.2} parent=0 // pred_check
    _
  $region3: #{dropblock2d_pallas.2} parent=0 // pred_check_branch
    %9 = sbr.rel (0) target = $region5
  $region4: #{dropblock2d_pallas.2} parent=0 // pred_region
    _
  $region5: #{dropblock2d_pallas.2} parent=0 // pred_fallthru
    _
  // Predicated region
  $region6: #{dropblock2d_pallas.2} parent=0 // pred_check
    _
  $region7: #{dropblock2d_pallas.2} parent=0 // pred_check_branch
    %11 = sbr.rel (0) target = $region9
  $region8: #{dropblock2d_pallas.2} parent=0 // pred_region
    _
  $region9: #{dropblock2d_pallas.2} parent=0 // pred_fallthru
    _
  %s12 = sld [smem:[#allocation2]]
  %v13 = vld [vmem:[%s1] sm:$0xff]
  %v14 = vld [vmem:[%s1 + $0x8] sm:$0xff]
  %v15 = vld [vmem:[%s1 + $0x10] sm:$0xff]
  %v16 = vld [vmem:[%s1 + $0x18] sm:$0xff]
  %v17 = vstv %s12
  %vm18 = vcmp.lt.f32.partialorder %v13, %v17
  %vm19 = vcmp.lt.f32.partialorder %v14, %v17
  %vm20 = vcmp.lt.f32.partialorder %v15, %v17
  %vm21 = vcmp.lt.f32.partialorder %v16, %v17
  %v22 = vsel %vm18, 1, 0
  %v23 = vsel %vm19, 1, 0
  %v24 = vsel %vm20, 1, 0
  %v25 = vsel %vm21, 1, 0
  %v26 = vcvt.s32.f32 %v22
  %v27 = vcvt.s32.f32 %v23
  %v28 = vcvt.s32.f32 %v24
  %v29 = vcvt.s32.f32 %v25
  %34 = vrot.lane.b32.xlu0 %v26, 1
  %v35 = vpop.permute.xlu0 %34
  %36 = vrot.lane.b32.xlu0 %v27, 1
  %v37 = vpop.permute.xlu0 %36
  %38 = vrot.lane.b32.xlu0 %v28, 1
  %v39 = vpop.permute.xlu0 %38
  %40 = vrot.lane.b32.xlu0 %v29, 1
  %v41 = vpop.permute.xlu0 %40
  %vm46 = vcmask 7168
  %v47 = vsel %vm46, 0.0, %v35
  %v48 = vsel %vm46, 0.0, %v37
  %v49 = vsel %vm46, 0.0, %v39
  %v50 = vsel %vm46, 0.0, %v41
  %v51 = vmax.f32 %v26, %v47
  %v52 = vmax.f32 %v27, %v48
  %v53 = vmax.f32 %v28, %v49
  %v54 = vmax.f32 %v29, %v50
  %55 = vrot.lane.b32.xlu0 %v26, 127
  %v56 = vpop.permute.xlu0 %55
  %57 = vrot.lane.b32.xlu0 %v27, 127
  %v58 = vpop.permute.xlu0 %57
  %59 = vrot.lane.b32.xlu0 %v28, 127
  %v60 = vpop.permute.xlu0 %59
  %61 = vrot.lane.b32.xlu0 %v29, 127
  %v62 = vpop.permute.xlu0 %61
  %vm67 = vcmask 121856
  %v68 = vsel %vm67, %v56, 0.0
  %v69 = vsel %vm67, %v58, 0.0
  %v70 = vsel %vm67, %v60, 0.0
  %v71 = vsel %vm67, %v62, 0.0
  %v72 = vmax.f32 %v51, %v68
  %v73 = vmax.f32 %v52, %v69
  %v74 = vmax.f32 %v53, %v70
  %v75 = vmax.f32 %v54, %v71
  %vm80 = vcmask 1040384
  %v81 = vrot.slane %v72, 7
  %v82 = vrot.slane %v73, 7
  %v83 = vsel %vm80, %v81, %v82
  %v84 = vrot.slane %v74, 7
  %v85 = vrot.slane %v75, 7
  %v86 = vsel %vm80, %v84, %v85
  %v91 = vsel %vm80, 0.0, %v81
  %v92 = vsel %vm80, 0.0, %v84
  %v93 = vmax.f32 %v72, %v91
  %v94 = vmax.f32 %v73, %v83
  %v95 = vmax.f32 %v74, %v92
  %v96 = vmax.f32 %v75, %v86
  %vm97 = vcmask 1046528
  %v98 = vrot.slane %v72, 1
  %v99 = vrot.slane %v73, 1
  %v100 = vsel %vm97, %v98, %v99
  %v101 = vrot.slane %v74, 1
  %v102 = vrot.slane %v75, 1
  %v103 = vsel %vm97, %v101, %v102
  %v108 = vsel %vm97, %v99, 0.0
  %v109 = vsel %vm97, %v102, 0.0
  %v110 = vmax.f32 %v93, %v100
  %v111 = vmax.f32 %v94, %v108
  %v112 = vmax.f32 %v95, %v103
  %v113 = vmax.f32 %v96, %v109
  %v114 = vsub.f32 1.0, %v110
  %v115 = vsub.f32 1.0, %v111
  %v116 = vsub.f32 1.0, %v112
  %v117 = vsub.f32 1.0, %v113
  %vm118 = vcmask 130048
  %v119 = vsel %vm118, %v114, 0.0
  %v120 = vsel %vm118, %v115, 0.0
  %v121 = vadd.f32 %v119, %v120
  %v122 = vsel %vm118, %v116, 0.0
  %v123 = vadd.f32 %v121, %v122
  %v124 = vsel %vm118, %v117, 0.0
  %v125 = vadd.f32 %v123, %v124
  %126 = vadd.xlane.f32.xlu0 %v125
  %v127 = vpop.xlane.xlu0 %126
  %v128 = vrot.slane %v127, 4
  %v129 = vadd.f32 %v127, %v128
  %v130 = vrot.slane %v129, 2
  %v131 = vadd.f32 %v129, %v130
  %v132 = vrot.slane %v131, 1
  %v133 = vadd.f32 %v131, %v132
  %s134 = vtos %v133
  %v135 = vstv %s134
  %v136 = vrcp.pop %v135
  %s137 = vtos %v136
  %s138 = smul.f32 512.0, %s137
  %v139 = vstv %s138
  %v140 = vmul.f32 %v114, %v139
  %v141 = vmul.f32 %v115, %v139
  %v142 = vmul.f32 %v116, %v139
  %v143 = vmul.f32 %v117, %v139
  %144 = vst.msk [vmem:[%s2] sm:$0xff] %vm118, %v140
  %145 = vst.msk [vmem:[%s2 + $0x8] sm:$0xff] %vm118, %v141
  %146 = vst.msk [vmem:[%s2 + $0x10] sm:$0xff] %vm118, %v142
  %147 = vst.msk [vmem:[%s2 + $0x18] sm:$0xff] %vm118, %v143
  // Predicated region
  $region10: #{dropblock2d_pallas.2} parent=0 // pred_check
    _
  $region11: #{dropblock2d_pallas.2} parent=0 // pred_check_branch
    %149 = sbr.rel (0) target = $region13
  $region12: #{dropblock2d_pallas.2} parent=0 // pred_region
    _
  $region13: #{dropblock2d_pallas.2} parent=0 // pred_fallthru
    _
  // Predicated region
  $region14: #{dropblock2d_pallas.2} parent=0 // pred_check
    _
  $region15: #{dropblock2d_pallas.2} parent=0 // pred_check_branch
    %151 = sbr.rel (0) target = $region17
  $region16: #{dropblock2d_pallas.2} parent=0 // pred_region
    _
  $region17: #{dropblock2d_pallas.2} parent=0 // pred_fallthru
    _

// kernel: dropblock2d_pallas.3
$region0: #{dropblock2d_pallas.3}
  #allocation0 [shape = 'u32[]', space=smem, size = 0x4, offset = 0x4, fixed_abs, tag = 'smem constant byte address 0x4 - core index']
  #allocation1 [shape = 'u32[144,128]{1,0:T(1,128)}', space=vmem, size = 0x12000, scoped, tag = 'internal scratch']
  %s0 = inlined_call_operand.vmem [shape: f32[2,256], index: 0, kind: input, shape index: {}]
  %s1 = inlined_call_operand.vmem [shape: f32[2,4,256], index: 1, kind: input, shape index: {}]
  %s2 = inlined_call_operand.vmem [shape: f32[2,4,256], index: 2, kind: output, shape index: {}]
  %s3 = sld [smem:[#allocation0]]
  $region18: #{dropblock2d_pallas.3} parent=0
    _
  %s5 = ssub.s32 1, %s3
  %s6 = scalar_select 0, %s5, %s3
  // Predicated region
  $region2: #{dropblock2d_pallas.3} parent=0 // pred_check
    _
  $region3: #{dropblock2d_pallas.3} parent=0 // pred_check_branch
    %8 = sbr.rel (0) target = $region5
  $region4: #{dropblock2d_pallas.3} parent=0 // pred_region
    _
  $region5: #{dropblock2d_pallas.3} parent=0 // pred_fallthru
    _
  // Predicated region
  $region6: #{dropblock2d_pallas.3} parent=0 // pred_check
    _
  $region7: #{dropblock2d_pallas.3} parent=0 // pred_check_branch
    %10 = sbr.rel (0) target = $region9
  $region8: #{dropblock2d_pallas.3} parent=0 // pred_region
    _
  $region9: #{dropblock2d_pallas.3} parent=0 // pred_fallthru
    _
  %v11 = vld [vmem:[%s0] sm:$0xf]
  %v12 = vld [vmem:[%s1] sm:$0xff]
  %v13 = vld [vmem:[%s1 + $0x8] sm:$0xff]
  %v16 = vunpack.c.l.s4 1966171168
  %v17 = vunpack.c.0.s8 %v16
  %v18 = vlaneseq
  %v19 = vshrl.u32 %v18, 7
  %v20 = vsub.s32 %v17, %v19
  %v21 = vrot.slane %v11, %v20
  %v22 = vcombine.high %v21, %v21
  %v23 = vlaneseq
  %v24 = vshrl.u32 %v23, 7
  %v25 = vsub.s32 0, %v24
  %v26 = vrot.slane %v21, %v25
  %v27 = vlaneseq
  %v28 = vshrl.u32 %v27, 7
  %v29 = vsub.s32 1, %v28
  %v30 = vrot.slane %v21, %v29
  %v31 = vlaneseq
  %v32 = vshrl.u32 %v31, 7
  %v33 = vsub.s32 0, %v32
  %v34 = vrot.slane %v22, %v33
  %v35 = vlaneseq
  %v36 = vshrl.u32 %v35, 7
  %v37 = vsub.s32 1, %v36
  %v38 = vrot.slane %v22, %v37
  %v39 = vcombine.low %v26, %v30
  %v40 = vcombine.low %v34, %v38
  %v43 = vmul.f32 %v12, %v39
  %v44 = vmul.f32 %v13, %v40
  %45 = vst [vmem:[%s2] sm:$0xff] %v43
  %46 = vst [vmem:[%s2 + $0x8] sm:$0xff] %v44
  // Predicated region
  $region10: #{dropblock2d_pallas.3} parent=0 // pred_check
    _
  $region11: #{dropblock2d_pallas.3} parent=0 // pred_check_branch
    %48 = sbr.rel (0) target = $region13
  $region12: #{dropblock2d_pallas.3} parent=0 // pred_region
    _
  $region13: #{dropblock2d_pallas.3} parent=0 // pred_fallthru
    _
  // Predicated region
  $region14: #{dropblock2d_pallas.3} parent=0 // pred_check
    _
  $region15: #{dropblock2d_pallas.3} parent=0 // pred_check_branch
    %50 = sbr.rel (0) target = $region17
  $region16: #{dropblock2d_pallas.3} parent=0 // pred_region
    _
  $region17: #{dropblock2d_pallas.3} parent=0 // pred_fallthru
    _

</llo_original>
